<compile_context>
chip_gen: v7x
topology: tpu7x:2x2x1
jax: 0.10.0
libtpu: 0.0.40
codegen_flags: <defaults>
</compile_context>

<pallas_src>
import functools

import jax
import jax.numpy as jnp
from jax.experimental import pallas as pl
from jax.experimental.pallas import tpu as pltpu

INPUT_DIM = 128
LATENT_DIM = 16
N_REGIMES = 7
CLS_PAD = 32                    # classifier head padded from 7 to 32 output lanes
DEC_H2 = 64                     # decoder hidden-2 width
HEAD_DIM = CLS_PAD + DEC_H2     # fused head output width (96)
AUX_DIM = 2 * LATENT_DIM + CLS_PAD  # packed output slab: [mean(16)|log_var(16)|probs32(32)] = 64

# per-row MAC count of the fused network (also = weight element count)
_MACS_PER_ROW = (INPUT_DIM * 64 + 64 * 32 + 32 * 2 * LATENT_DIM
                 + LATENT_DIM * 64 + 64 * HEAD_DIM + DEC_H2 * INPUT_DIM)


def _regime_kernel(
    x_ref, eps_ref,
    we1_ref, we2_ref, we3_ref, wz_ref, wh_ref, wd3_ref,   # bf16 weights
    b_ref,                                                # packed f32 biases (8,128)
    rec_ref, aux_ref,
):
    bf16 = jnp.bfloat16
    x = x_ref[...].astype(bf16)          # (tb, 128)  bf16 (accepts f32 or bf16 input)
    eps = eps_ref[...].astype(jnp.float32)
    b = b_ref[...]                       # (8, 128) f32
    be1 = b[0:1, :64]
    be2 = b[1:2, :32]
    be3 = b[2:3, :2 * LATENT_DIM]
    bz = b[3:4, :64]
    bh = b[4:5, :HEAD_DIM]
    bd3 = b[5:6, :INPUT_DIM]

    # ---- encoder: 128 -> 64 -> 32 -> 2*latent (bf16 MXU, f32 accumulate) ----
    h = jnp.dot(x, we1_ref[...], preferred_element_type=jnp.float32) + be1
    h = jnp.maximum(h, 0.0)
    h = jnp.dot(h.astype(bf16), we2_ref[...], preferred_element_type=jnp.float32) + be2
    h = jnp.maximum(h, 0.0)
    h = jnp.dot(h.astype(bf16), we3_ref[...], preferred_element_type=jnp.float32) + be3

    mean = h[:, :LATENT_DIM]             # (tb, 16)
    log_var = h[:, LATENT_DIM:]          # (tb, 16)

    # ---- reparameterize (f32): z = mean + eps * exp(0.5 * log_var) ----
    z = mean + eps * jnp.exp(0.5 * log_var)

    # ---- fused first layers of classifier + decoder: one 16 -> 64 matmul ----
    zh = jnp.dot(z.astype(bf16), wz_ref[...], preferred_element_type=jnp.float32) + bz
    zh = jnp.maximum(zh, 0.0)            # (tb, 64) = [c(32) | d(32)]

    # ---- fused block-diagonal head: [classifier 32->7 (padded to 32) | decoder 32->64] ----
    hh = jnp.dot(zh.astype(bf16), wh_ref[...], preferred_element_type=jnp.float32) + bh
    logits = hh[:, :CLS_PAD]             # pad lanes carry -1e30 bias -> exp == 0
    d = jnp.maximum(hh[:, CLS_PAD:], 0.0)

    # ---- softmax over the padded 32 lanes (exact reciprocal: probs sum to 1) ----
    logits = logits - jnp.max(logits, axis=-1, keepdims=True)
    e = jnp.exp(logits)
    probs32 = e / jnp.sum(e, axis=-1, keepdims=True)   # (tb, 32), lanes 7: are exactly 0

    # ---- decoder tail: 64 -> 128 ----
    rec = jnp.dot(d.astype(bf16), wd3_ref[...], preferred_element_type=jnp.float32) + bd3

    rec_ref[...] = rec.astype(rec_ref.dtype)
    # Lane-dense aux slab written with two direct sub-slice stores (no concat / pad).
    aux_ref[:, :2 * LATENT_DIM] = h
    aux_ref[:, 2 * LATENT_DIM:] = probs32


def _linear_params(key, fan_in, fan_out):
    """Deterministic init, PyTorch-Linear-like scale. Returns W:[in,out], b:[1,out]."""
    kw, kb = jax.random.split(key)
    bound = 1.0 / jnp.sqrt(float(fan_in))
    w = jax.random.uniform(kw, (fan_in, fan_out), jnp.float32, -bound, bound)
    b = jax.random.uniform(kb, (1, fan_out), jnp.float32, -bound, bound)
    return w, b


def init_params(key):
    shapes = [
        (INPUT_DIM, 64), (64, 32), (32, 2 * LATENT_DIM),        # encoder
        (LATENT_DIM, 32), (32, N_REGIMES),                       # classifier
        (LATENT_DIM, 32), (32, 64), (64, INPUT_DIM),             # decoder
    ]
    keys = jax.random.split(key, len(shapes))
    params = []
    for k, (fi, fo) in zip(keys, shapes):
        params.extend(_linear_params(k, fi, fo))
    return params  # flat list: [w,b] * 8 layers (original, unfused, f32)


def prepare_params(params):
    """Fuse wc1|wd1 and [wc2(pad)|wd2] block-diagonal, cast weights to bf16, pack biases."""
    (we1, be1, we2, be2, we3, be3,
     wc1, bc1, wc2, bc2,
     wd1, bd1, wd2, bd2, wd3, bd3) = params

    # Fusion 1: classifier L1 + decoder L1 (both 16->32) -> one 16->64.
    wz = jnp.concatenate([wc1, wd1], axis=1)      # (16, 64)
    bz = jnp.concatenate([bc1, bd1], axis=1)      # (1, 64)

    # Fusion 2: classifier head (32->7) zero-padded to 32 cols (pad bias -1e30 so the
    # padded logits vanish under softmax) + decoder L2 (32->64), block-diagonal (64,96).
    wc2p = jnp.concatenate([wc2, jnp.zeros((32, CLS_PAD - N_REGIMES), wc2.dtype)], axis=1)
    bc2p = jnp.concatenate([bc2, jnp.full((1, CLS_PAD - N_REGIMES), -1e30, bc2.dtype)], axis=1)
    wh = jnp.zeros((64, HEAD_DIM), jnp.float32)
    wh = wh.at[:32, :CLS_PAD].set(wc2p).at[32:, CLS_PAD:].set(wd2)
    bh = jnp.concatenate([bc2p, bd2], axis=1)     # (1, 96)

    weights = [w.astype(jnp.bfloat16) for w in (we1, we2, we3, wz, wh, wd3)]
    biases = (be1, be2, be3, bz, bh, bd3)
    bpack = jnp.zeros((8, 128), jnp.float32)
    for r, bias in enumerate(biases):
        bpack = bpack.at[r, : bias.shape[-1]].set(bias.reshape(-1))
    return weights, bpack


def _choose_tile(B, cap=2048):
    """Largest multiple-of-8 divisor of B up to `cap`; split to >=2 steps when cheap."""
    if B <= cap:
        tb = B
    else:
        tb = 0
        for cand in range(cap, 0, -1):
            if B % cand == 0 and cand % 8 == 0:
                tb = cand
                break
        if tb == 0:  # no multiple-of-8 divisor <= cap: fall back to largest divisor
            for cand in range(cap, 0, -1):
                if B % cand == 0:
                    tb = cand
                    break
    # Give the v7x megacore >= 2 parallel grid steps when we can keep tb a multiple of 8.
    if tb == B and B >= 16 and (B // 2) % 8 == 0:
        tb = B // 2
    return tb


def _vmem_estimate_bytes(tb, x_itemsize, out_itemsize):
    # double-buffered streaming tiles + f32 intermediates (rough) + tiny weights/biases
    per_row = 2 * (INPUT_DIM * x_itemsize + LATENT_DIM * 4
                   + INPUT_DIM * out_itemsize + AUX_DIM * 4) + 3 * 1024
    w_bytes = 2 * (_MACS_PER_ROW * 2) + 8 * 128 * 4
    return tb * per_row + w_bytes


@functools.partial(jax.jit, static_argnames=("tb", "out_dtype"))
def market_regime_forward(x, eps, weights, bpack, tb=None, out_dtype=jnp.float32):
    B = x.shape[0]
    if tb is None:
        tb = _choose_tile(B)
    else:
        assert B % tb == 0, "batch must be divisible by the explicit batch tile"
        assert tb == B or tb % 8 == 0
    grid = (B // tb,)

    def batch_spec(n):
        return pl.BlockSpec((tb, n), lambda i: (i, 0))

    def full_spec(shape):
        return pl.BlockSpec(shape, lambda i: (0,) * len(shape))

    in_specs = (
        [batch_spec(INPUT_DIM), batch_spec(LATENT_DIM)]
        + [full_spec(w.shape) for w in weights]
        + [full_spec(bpack.shape)]
    )
    out_specs = [batch_spec(INPUT_DIM), batch_spec(AUX_DIM)]
    out_shape = (
        jax.ShapeDtypeStruct((B, INPUT_DIM), out_dtype),      # reconstruction
        jax.ShapeDtypeStruct((B, AUX_DIM), jnp.float32),      # packed mean|log_var|probs32
    )

    out_itemsize = jnp.dtype(out_dtype).itemsize
    # Only override scoped VMEM when the estimate exceeds the conservative v5e default.
    vmem_limit = None
    est = _vmem_estimate_bytes(tb, x.dtype.itemsize, out_itemsize)
    if est > (12 << 20):
        vmem_limit = min(2 * est, 64 << 20)

    cost = pl.CostEstimate(
        flops=2 * B * _MACS_PER_ROW,
        transcendentals=B * (LATENT_DIM + CLS_PAD),
        bytes_accessed=(B * (INPUT_DIM * x.dtype.itemsize + LATENT_DIM * eps.dtype.itemsize
                             + INPUT_DIM * out_itemsize + AUX_DIM * 4)
                        + _MACS_PER_ROW * 2 + 8 * 128 * 4),
    )

    rec, aux = pl.pallas_call(
        _regime_kernel,
        out_shape=out_shape,
        grid_spec=pl.GridSpec(grid=grid, in_specs=in_specs, out_specs=out_specs),
        compiler_params=pltpu.CompilerParams(
            dimension_semantics=("parallel",),
            vmem_limit_bytes=vmem_limit,
        ),
        cost_estimate=cost,
    )(x, eps, *weights, bpack)

    mean = aux[:, :LATENT_DIM]
    log_var = aux[:, LATENT_DIM:2 * LATENT_DIM]
    probs = aux[:, 2 * LATENT_DIM:2 * LATENT_DIM + N_REGIMES]
    return rec, probs, mean, log_var


def _reference_forward(x, eps, params):
    (we1, be1, we2, be2, we3, be3,
     wc1, bc1, wc2, bc2,
     wd1, bd1, wd2, bd2, wd3, bd3) = params
    h = jnp.maximum(x @ we1 + be1, 0.0)
    h = jnp.maximum(h @ we2 + be2, 0.0)
    h = h @ we3 + be3
    mean, log_var = h[:, :LATENT_DIM], h[:, LATENT_DIM:]
    z = mean + eps * jnp.exp(0.5 * log_var)
    c = jnp.maximum(z @ wc1 + bc1, 0.0)
    probs = jax.nn.softmax(c @ wc2 + bc2, axis=-1)
    d = jnp.maximum(z @ wd1 + bd1, 0.0)
    d = jnp.maximum(d @ wd2 + bd2, 0.0)
    rec = d @ wd3 + bd3
    return rec, probs, mean, log_var


if __name__ == "__main__":
    key = jax.random.PRNGKey(0)
    k_param, k_x, k_eps = jax.random.split(key, 3)

    # Small batch; auto tile selection gives tb=32, grid=(2,) -> exercises the tiled,
    # megacore-parallel path while keeping shapes tiny.
    B = 64
    params = init_params(k_param)
    weights, bpack = prepare_params(params)
    x = jax.random.normal(k_x, (B, INPUT_DIM), jnp.float32)
    eps = jax.random.normal(k_eps, (B, LATENT_DIM), jnp.float32)

    outs = market_regime_forward(x, eps, weights, bpack)
    outs = jax.block_until_ready(outs)

    refs = _reference_forward(x, eps, params)
    names = ("reconstruction", "regime_probs", "mean", "log_var")
    for name, o, r in zip(names, outs, refs):
        assert o.shape == r.shape and o.dtype == r.dtype, name
        # bf16 MXU matmuls vs f32 reference -> slightly looser tolerance.
        assert jnp.allclose(o, r, atol=3e-2, rtol=3e-2), f"mismatch vs reference: {name}"
    assert jnp.allclose(outs[1].sum(-1), 1.0, atol=1e-4), "probs not normalized"

    # bf16 x accepted directly at the kernel boundary (halves the largest input stream);
    # numerically equivalent to the in-kernel cast, so only a loose drift check.
    outs_bf16 = market_regime_forward(x.astype(jnp.bfloat16), eps, weights, bpack)
    outs_bf16 = jax.block_until_ready(outs_bf16)
    assert jnp.allclose(outs_bf16[0], refs[0], atol=1e-1, rtol=1e-1), "bf16-x reconstruction drifted"

    print("KERNEL_OK")
</pallas_src>

<mosaic_0001>
module attributes {stable_mosaic.version = 11 : i64} {
  func.func @_regime_kernel(%arg0: i32, %arg1: memref<32x128xf32, #tpu.memory_space<vmem>>, %arg2: memref<32x16xf32, #tpu.memory_space<vmem>>, %arg3: memref<128x64xbf16, #tpu.memory_space<vmem>>, %arg4: memref<64x32xbf16, #tpu.memory_space<vmem>>, %arg5: memref<32x32xbf16, #tpu.memory_space<vmem>>, %arg6: memref<16x64xbf16, #tpu.memory_space<vmem>>, %arg7: memref<64x96xbf16, #tpu.memory_space<vmem>>, %arg8: memref<64x128xbf16, #tpu.memory_space<vmem>>, %arg9: memref<8x128xf32, #tpu.memory_space<vmem>>, %arg10: memref<32x128xf32, #tpu.memory_space<vmem>>, %arg11: memref<32x64xf32, #tpu.memory_space<vmem>>) attributes {dimension_semantics = [#tpu.dimension_semantics<parallel>], iteration_bounds = array<i64: 2>, scalar_prefetch = 0 : i64, scratch_operands = 0 : i64, tpu.core_type = #tpu.core_type<tc>, window_params = [{transform_indices = @transform_0, window_bounds = array<i64: 32, 128>}, {transform_indices = @transform_1, window_bounds = array<i64: 32, 16>}, {pipeline_mode = #tpu.pipeline_mode<synchronous>, transform_indices = @transform_2, window_bounds = array<i64: 128, 64>}, {pipeline_mode = #tpu.pipeline_mode<synchronous>, transform_indices = @transform_3, window_bounds = array<i64: 64, 32>}, {pipeline_mode = #tpu.pipeline_mode<synchronous>, transform_indices = @transform_4, window_bounds = array<i64: 32, 32>}, {pipeline_mode = #tpu.pipeline_mode<synchronous>, transform_indices = @transform_5, window_bounds = array<i64: 16, 64>}, {pipeline_mode = #tpu.pipeline_mode<synchronous>, transform_indices = @transform_6, window_bounds = array<i64: 64, 96>}, {pipeline_mode = #tpu.pipeline_mode<synchronous>, transform_indices = @transform_7, window_bounds = array<i64: 64, 128>}, {pipeline_mode = #tpu.pipeline_mode<synchronous>, transform_indices = @transform_8, window_bounds = array<i64: 8, 128>}, {transform_indices = @transform_9, window_bounds = array<i64: 32, 128>}, {transform_indices = @transform_10, window_bounds = array<i64: 32, 64>}]} {
    %c0 = arith.constant 0 : index
    %c0_0 = arith.constant 0 : index
    %0 = vector.load %arg1[%c0, %c0_0] : memref<32x128xf32, #tpu.memory_space<vmem>>, vector<32x128xf32>
    %1 = arith.truncf %0 : vector<32x128xf32> to vector<32x128xbf16>
    %c0_1 = arith.constant 0 : index
    %c0_2 = arith.constant 0 : index
    %2 = vector.load %arg2[%c0_1, %c0_2] : memref<32x16xf32, #tpu.memory_space<vmem>>, vector<32x16xf32>
    %c0_3 = arith.constant 0 : index
    %c0_4 = arith.constant 0 : index
    %3 = vector.load %arg9[%c0_3, %c0_4] : memref<8x128xf32, #tpu.memory_space<vmem>>, vector<8x128xf32>
    %4 = vector.extract_strided_slice %3 {offsets = [0, 0], sizes = [1, 64], strides = [1, 1]} : vector<8x128xf32> to vector<1x64xf32>
    %5 = vector.extract_strided_slice %3 {offsets = [1, 0], sizes = [1, 32], strides = [1, 1]} : vector<8x128xf32> to vector<1x32xf32>
    %6 = vector.extract_strided_slice %3 {offsets = [2, 0], sizes = [1, 32], strides = [1, 1]} : vector<8x128xf32> to vector<1x32xf32>
    %7 = vector.extract_strided_slice %3 {offsets = [3, 0], sizes = [1, 64], strides = [1, 1]} : vector<8x128xf32> to vector<1x64xf32>
    %8 = vector.extract_strided_slice %3 {offsets = [4, 0], sizes = [1, 96], strides = [1, 1]} : vector<8x128xf32> to vector<1x96xf32>
    %9 = vector.extract_strided_slice %3 {offsets = [5, 0], sizes = [1, 128], strides = [1, 1]} : vector<8x128xf32> to vector<1x128xf32>
    %c0_5 = arith.constant 0 : index
    %c0_6 = arith.constant 0 : index
    %10 = vector.load %arg3[%c0_5, %c0_6] : memref<128x64xbf16, #tpu.memory_space<vmem>>, vector<128x64xbf16>
    %cst = arith.constant dense<0.000000e+00> : vector<32x64xf32>
    %11 = tpu.matmul %1, %10, %cst {dimension_numbers = #tpu.dot_dimension_numbers<[1], [0], [0], [1], [0, 0, 1, 1], [], []>} : vector<32x128xbf16>, vector<128x64xbf16>, vector<32x64xf32> -> vector<32x64xf32>
    %12 = vector.broadcast %4 : vector<1x64xf32> to vector<32x64xf32>
    %13 = arith.addf %11, %12 : vector<32x64xf32>
    %cst_7 = arith.constant 0.000000e+00 : f32
    %14 = vector.broadcast %cst_7 : f32 to vector<32x64xf32>
    %15 = arith.maximumf %13, %14 : vector<32x64xf32>
    %16 = arith.truncf %15 : vector<32x64xf32> to vector<32x64xbf16>
    %c0_8 = arith.constant 0 : index
    %c0_9 = arith.constant 0 : index
    %17 = vector.load %arg4[%c0_8, %c0_9] : memref<64x32xbf16, #tpu.memory_space<vmem>>, vector<64x32xbf16>
    %cst_10 = arith.constant dense<0.000000e+00> : vector<32x32xf32>
    %18 = tpu.matmul %16, %17, %cst_10 {dimension_numbers = #tpu.dot_dimension_numbers<[1], [0], [0], [1], [0, 0, 1, 1], [], []>} : vector<32x64xbf16>, vector<64x32xbf16>, vector<32x32xf32> -> vector<32x32xf32>
    %19 = vector.broadcast %5 : vector<1x32xf32> to vector<32x32xf32>
    %20 = arith.addf %18, %19 : vector<32x32xf32>
    %cst_11 = arith.constant 0.000000e+00 : f32
    %21 = vector.broadcast %cst_11 : f32 to vector<32x32xf32>
    %22 = arith.maximumf %20, %21 : vector<32x32xf32>
    %23 = arith.truncf %22 : vector<32x32xf32> to vector<32x32xbf16>
    %c0_12 = arith.constant 0 : index
    %c0_13 = arith.constant 0 : index
    %24 = vector.load %arg5[%c0_12, %c0_13] : memref<32x32xbf16, #tpu.memory_space<vmem>>, vector<32x32xbf16>
    %cst_14 = arith.constant dense<0.000000e+00> : vector<32x32xf32>
    %25 = tpu.matmul %23, %24, %cst_14 {dimension_numbers = #tpu.dot_dimension_numbers<[1], [0], [0], [1], [0, 0, 1, 1], [], []>} : vector<32x32xbf16>, vector<32x32xbf16>, vector<32x32xf32> -> vector<32x32xf32>
    %26 = vector.broadcast %6 : vector<1x32xf32> to vector<32x32xf32>
    %27 = arith.addf %25, %26 : vector<32x32xf32>
    %28 = vector.extract_strided_slice %27 {offsets = [0, 0], sizes = [32, 16], strides = [1, 1]} : vector<32x32xf32> to vector<32x16xf32>
    %29 = vector.extract_strided_slice %27 {offsets = [0, 16], sizes = [32, 16], strides = [1, 1]} : vector<32x32xf32> to vector<32x16xf32>
    %cst_15 = arith.constant 5.000000e-01 : f32
    %30 = vector.broadcast %cst_15 : f32 to vector<32x16xf32>
    %31 = arith.mulf %30, %29 : vector<32x16xf32>
    %32 = math.exp %31 : vector<32x16xf32>
    %33 = arith.mulf %2, %32 : vector<32x16xf32>
    %34 = arith.addf %28, %33 : vector<32x16xf32>
    %35 = arith.truncf %34 : vector<32x16xf32> to vector<32x16xbf16>
    %c0_16 = arith.constant 0 : index
    %c0_17 = arith.constant 0 : index
    %36 = vector.load %arg6[%c0_16, %c0_17] : memref<16x64xbf16, #tpu.memory_space<vmem>>, vector<16x64xbf16>
    %cst_18 = arith.constant dense<0.000000e+00> : vector<32x64xf32>
    %37 = tpu.matmul %35, %36, %cst_18 {dimension_numbers = #tpu.dot_dimension_numbers<[1], [0], [0], [1], [0, 0, 1, 1], [], []>} : vector<32x16xbf16>, vector<16x64xbf16>, vector<32x64xf32> -> vector<32x64xf32>
    %38 = vector.broadcast %7 : vector<1x64xf32> to vector<32x64xf32>
    %39 = arith.addf %37, %38 : vector<32x64xf32>
    %cst_19 = arith.constant 0.000000e+00 : f32
    %40 = vector.broadcast %cst_19 : f32 to vector<32x64xf32>
    %41 = arith.maximumf %39, %40 : vector<32x64xf32>
    %42 = arith.truncf %41 : vector<32x64xf32> to vector<32x64xbf16>
    %c0_20 = arith.constant 0 : index
    %c0_21 = arith.constant 0 : index
    %43 = vector.load %arg7[%c0_20, %c0_21] : memref<64x96xbf16, #tpu.memory_space<vmem>>, vector<64x96xbf16>
    %cst_22 = arith.constant dense<0.000000e+00> : vector<32x96xf32>
    %44 = tpu.matmul %42, %43, %cst_22 {dimension_numbers = #tpu.dot_dimension_numbers<[1], [0], [0], [1], [0, 0, 1, 1], [], []>} : vector<32x64xbf16>, vector<64x96xbf16>, vector<32x96xf32> -> vector<32x96xf32>
    %45 = vector.broadcast %8 : vector<1x96xf32> to vector<32x96xf32>
    %46 = arith.addf %44, %45 : vector<32x96xf32>
    %47 = vector.extract_strided_slice %46 {offsets = [0, 0], sizes = [32, 32], strides = [1, 1]} : vector<32x96xf32> to vector<32x32xf32>
    %48 = vector.extract_strided_slice %46 {offsets = [0, 32], sizes = [32, 64], strides = [1, 1]} : vector<32x96xf32> to vector<32x64xf32>
    %cst_23 = arith.constant 0.000000e+00 : f32
    %49 = vector.broadcast %cst_23 : f32 to vector<32x64xf32>
    %50 = arith.maximumf %48, %49 : vector<32x64xf32>
    %cst_24 = arith.constant dense<0xFF800000> : vector<32xf32>
    %51 = vector.multi_reduction <maximumf>, %47, %cst_24 [1] : vector<32x32xf32> to vector<32xf32>
    %52 = vector.shape_cast %51 : vector<32xf32> to vector<32x1xf32>
    %53 = vector.broadcast %52 : vector<32x1xf32> to vector<32x32xf32>
    %54 = arith.subf %47, %53 : vector<32x32xf32>
    %55 = math.exp %54 : vector<32x32xf32>
    %cst_25 = arith.constant dense<0.000000e+00> : vector<32xf32>
    %56 = vector.multi_reduction <add>, %55, %cst_25 [1] : vector<32x32xf32> to vector<32xf32>
    %57 = vector.shape_cast %56 : vector<32xf32> to vector<32x1xf32>
    %58 = vector.broadcast %57 : vector<32x1xf32> to vector<32x32xf32>
    %59 = arith.divf %55, %58 : vector<32x32xf32>
    %60 = arith.truncf %50 : vector<32x64xf32> to vector<32x64xbf16>
    %c0_26 = arith.constant 0 : index
    %c0_27 = arith.constant 0 : index
    %61 = vector.load %arg8[%c0_26, %c0_27] : memref<64x128xbf16, #tpu.memory_space<vmem>>, vector<64x128xbf16>
    %cst_28 = arith.constant dense<0.000000e+00> : vector<32x128xf32>
    %62 = tpu.matmul %60, %61, %cst_28 {dimension_numbers = #tpu.dot_dimension_numbers<[1], [0], [0], [1], [0, 0, 1, 1], [], []>} : vector<32x64xbf16>, vector<64x128xbf16>, vector<32x128xf32> -> vector<32x128xf32>
    %63 = vector.broadcast %9 : vector<1x128xf32> to vector<32x128xf32>
    %64 = arith.addf %62, %63 : vector<32x128xf32>
    %c0_29 = arith.constant 0 : index
    %c0_30 = arith.constant 0 : index
    %65 = vector.load %arg10[%c0_29, %c0_30] : memref<32x128xf32, #tpu.memory_space<vmem>>, vector<32x128xf32>
    tpu.vector_store %arg10[%c0_29, %c0_30], %64 {strides = array<i32>} : memref<32x128xf32, #tpu.memory_space<vmem>>, vector<32x128xf32>,
    %c0_31 = arith.constant 0 : index
    %c0_32 = arith.constant 0 : index
    %66 = vector.load %arg11[%c0_31, %c0_32] : memref<32x64xf32, #tpu.memory_space<vmem>>, vector<32x32xf32>
    tpu.vector_store %arg11[%c0_31, %c0_32], %27 {strides = array<i32>} : memref<32x64xf32, #tpu.memory_space<vmem>>, vector<32x32xf32>,
    %c0_33 = arith.constant 0 : index
    %c32 = arith.constant 32 : index
    %67 = vector.load %arg11[%c0_33, %c32] : memref<32x64xf32, #tpu.memory_space<vmem>>, vector<32x32xf32>
    tpu.vector_store %arg11[%c0_33, %c32], %59 {strides = array<i32>} : memref<32x64xf32, #tpu.memory_space<vmem>>, vector<32x32xf32>,
    return
  }
  func.func @transform_0(%arg0: i32) -> (i32, i32) {
    %c0_i32 = arith.constant 0 : i32
    %c0_i32_0 = arith.constant 0 : i32
    return %arg0, %c0_i32 : i32, i32
  }
  func.func @transform_1(%arg0: i32) -> (i32, i32) {
    %c0_i32 = arith.constant 0 : i32
    %c0_i32_0 = arith.constant 0 : i32
    return %arg0, %c0_i32 : i32, i32
  }
  func.func @transform_2(%arg0: i32) -> (i32, i32) {
    %c0_i32 = arith.constant 0 : i32
    %c0_i32_0 = arith.constant 0 : i32
    %c0_i32_1 = arith.constant 0 : i32
    return %c0_i32, %c0_i32_0 : i32, i32
  }
  func.func @transform_3(%arg0: i32) -> (i32, i32) {
    %c0_i32 = arith.constant 0 : i32
    %c0_i32_0 = arith.constant 0 : i32
    %c0_i32_1 = arith.constant 0 : i32
    return %c0_i32, %c0_i32_0 : i32, i32
  }
  func.func @transform_4(%arg0: i32) -> (i32, i32) {
    %c0_i32 = arith.constant 0 : i32
    %c0_i32_0 = arith.constant 0 : i32
    %c0_i32_1 = arith.constant 0 : i32
    return %c0_i32, %c0_i32_0 : i32, i32
  }
  func.func @transform_5(%arg0: i32) -> (i32, i32) {
    %c0_i32 = arith.constant 0 : i32
    %c0_i32_0 = arith.constant 0 : i32
    %c0_i32_1 = arith.constant 0 : i32
    return %c0_i32, %c0_i32_0 : i32, i32
  }
  func.func @transform_6(%arg0: i32) -> (i32, i32) {
    %c0_i32 = arith.constant 0 : i32
    %c0_i32_0 = arith.constant 0 : i32
    %c0_i32_1 = arith.constant 0 : i32
    return %c0_i32, %c0_i32_0 : i32, i32
  }
  func.func @transform_7(%arg0: i32) -> (i32, i32) {
    %c0_i32 = arith.constant 0 : i32
    %c0_i32_0 = arith.constant 0 : i32
    %c0_i32_1 = arith.constant 0 : i32
    return %c0_i32, %c0_i32_0 : i32, i32
  }
  func.func @transform_8(%arg0: i32) -> (i32, i32) {
    %c0_i32 = arith.constant 0 : i32
    %c0_i32_0 = arith.constant 0 : i32
    %c0_i32_1 = arith.constant 0 : i32
    return %c0_i32, %c0_i32_0 : i32, i32
  }
  func.func @transform_9(%arg0: i32) -> (i32, i32) {
    %c0_i32 = arith.constant 0 : i32
    %c0_i32_0 = arith.constant 0 : i32
    return %arg0, %c0_i32 : i32, i32
  }
  func.func @transform_10(%arg0: i32) -> (i32, i32) {
    %c0_i32 = arith.constant 0 : i32
    %c0_i32_0 = arith.constant 0 : i32
    return %arg0, %c0_i32 : i32, i32
  }
}

</mosaic_0001>

<llo_original>
// kernel: market_regime_forward.1
$region0: #{market_regime_forward.1}
  #allocation0 [shape = 'u32[]', space=smem, size = 0x4, offset = 0x4, fixed_abs, tag = 'smem constant byte address 0x4 - core index']
  #allocation1 [shape = 'u32[144,128]{1,0:T(1,128)}', space=vmem, size = 0x12000, scoped, tag = 'internal scratch']
  %s0 = inlined_call_operand.vmem [shape: f32[64,128], index: 0, kind: input, shape index: {}]
  %s1 = inlined_call_operand.vmem [shape: f32[64,16], index: 1, kind: input, shape index: {}]
  %s2 = inlined_call_operand.vmem [shape: bf16[128,64], index: 2, kind: input, shape index: {}]
  %s3 = inlined_call_operand.vmem [shape: bf16[64,32], index: 3, kind: input, shape index: {}]
  %s4 = inlined_call_operand.vmem [shape: bf16[32,32], index: 4, kind: input, shape index: {}]
  %s5 = inlined_call_operand.vmem [shape: bf16[16,64], index: 5, kind: input, shape index: {}]
  %s6 = inlined_call_operand.vmem [shape: bf16[64,96], index: 6, kind: input, shape index: {}]
  %s7 = inlined_call_operand.vmem [shape: bf16[64,128], index: 7, kind: input, shape index: {}]
  %s8 = inlined_call_operand.vmem [shape: f32[8,128], index: 8, kind: input, shape index: {}]
  %s9 = inlined_call_operand.hbm [shape: f32[64,128], index: 9, kind: output, shape index: {0}]
  %s10 = inlined_call_operand.vmem [shape: f32[64,64], index: 10, kind: output, shape index: {1}]
  %11 = xla_tuple %s9, %s10
  %s12 = sld [smem:[#allocation0]]
  $region77: #{market_regime_forward.1} parent=0
    _
  %s14 = ssub.s32 1, %s12
  %s15 = scalar_select 0, %s14, %s12
  $region1: #{market_regime_forward.1} parent=0
    #allocation2 [shape = 'u8[32768]{0}', space=vmem, size = 0x8000, scoped, tag = 'output window, operand 0']
    #allocation3 [shape = 's32[2]{0}', space=sflag, size = 0x8, scoped, tag = 'scoped memory for market_regime_forward.1']
    %16 = vsyncpa [#allocation3], 0
    %s17 = scalar_lea.sflag [#allocation3], 1
    %18 = vsyncpa %s17, 0
    loop: start=0, step=1, limit=4
    $region2: #{market_regime_forward.1} parent=1 // loop_pre_header
      _
    $region3: #{market_regime_forward.1} parent=1 // loop_header
      %s20 = sphi 0, %s24
      %p21 = scmp.ge.s32.totalorder %s20, 4
      %s30 = sphi 0, %s32
      %s33 = sphi 0, %s30
      %s34 = sphi 0, %s33
      %s50 = sphi 0, %s34
      %s56 = sphi 0, %s58
      %s59 = sphi 0, %s56
      %s60 = sphi 0, %s59
      %s76 = sphi 0, %s60
      %s80 = sphi 0, %s80
      %s82 = sphi 0, %s80
      %s83 = sphi 0, %s82
      %s97 = sphi 0, %s83
      %s101 = sphi 0, %s101
      %s103 = sphi 0, %s101
      %s104 = sphi 0, %s103
      %s118 = sphi 0, %s104
      %s122 = sphi 0, %s122
      %s124 = sphi 0, %s122
      %s125 = sphi 0, %s124
      %s139 = sphi 0, %s125
      %s143 = sphi 0, %s143
      %s145 = sphi 0, %s143
      %s146 = sphi 0, %s145
      %s160 = sphi 0, %s146
      %s164 = sphi 0, %s164
      %s166 = sphi 0, %s164
      %s167 = sphi 0, %s166
      %s181 = sphi 0, %s167
      %s185 = sphi 0, %s185
      %s187 = sphi 0, %s185
      %s188 = sphi 0, %s187
      %s202 = sphi 0, %s188
      %s206 = sphi 0, %s206
      %s208 = sphi 0, %s206
      %s209 = sphi 0, %s208
      %s223 = sphi 0, %s209
      %s229 = sphi 0, %s231
      %s232 = sphi 0, %s229
      %s233 = sphi 0, %s232
      %s249 = sphi 0, %s233
      %s255 = sphi 0, %s257
      %s258 = sphi 0, %s255
      %s259 = sphi 0, %s258
      %s275 = sphi 0, %s259
    $region4: #{market_regime_forward.1} parent=1 // loop_header_branch
      %23 = sbr.rel (%p21) target = $region8
    $region5: #{market_regime_forward.1} parent=1 // loop_body
      %s25 = ssub.s32 %s20, 1
      %s26 = ssub.s32 %s20, 2
      %s27 = sadd.s32 %s20, 1
      %s28 = ssub.s32 %s20, %s27
      %p29 = scmp.eq.s32.totalorder %s28, 0
      %s31 = sadd.s32 %s30, 1
      %s32 = scalar_select %p29, %s30, %s31
      %p35 = pneg %p29
      %p36 = scmp.eq.s32.totalorder %s20, 1
      %p37 = por %p35, %p36
      %p38 = scmp.ne.s32.totalorder %s30, %s33
      %p39 = scmp.eq.s32.totalorder %s20, 0
      %p40 = por %p38, %p39
      %p41 = scmp.ne.s32.totalorder %s30, %s33
      %p42 = scmp.eq.s32.totalorder %s25, 1
      %p43 = por %p41, %p42
      %p44 = scmp.ne.s32.totalorder %s33, %s34
      %p45 = scmp.eq.s32.totalorder %s25, 0
      %p46 = por %p44, %p45
      %p47 = scmp.ne.s32.totalorder %s33, %s34
      %p48 = scmp.eq.s32.totalorder %s26, 1
      %p49 = por %p47, %p48
      %p51 = scmp.ne.s32.totalorder %s34, %s50
      %p52 = scmp.eq.s32.totalorder %s26, 0
      %p53 = por %p51, %p52
      %s54 = ssub.s32 %s20, %s27
      %p55 = scmp.eq.s32.totalorder %s54, 0
      %s57 = sadd.s32 %s56, 1
      %s58 = scalar_select %p55, %s56, %s57
      %p61 = pneg %p55
      %p62 = scmp.eq.s32.totalorder %s20, 1
      %p63 = por %p61, %p62
      %p64 = scmp.ne.s32.totalorder %s56, %s59
      %p65 = scmp.eq.s32.totalorder %s20, 0
      %p66 = por %p64, %p65
      %p67 = scmp.ne.s32.totalorder %s56, %s59
      %p68 = scmp.eq.s32.totalorder %s25, 1
      %p69 = por %p67, %p68
      %p70 = scmp.ne.s32.totalorder %s59, %s60
      %p71 = scmp.eq.s32.totalorder %s25, 0
      %p72 = por %p70, %p71
      %p73 = scmp.ne.s32.totalorder %s59, %s60
      %p74 = scmp.eq.s32.totalorder %s26, 1
      %p75 = por %p73, %p74
      %p77 = scmp.ne.s32.totalorder %s60, %s76
      %p78 = scmp.eq.s32.totalorder %s26, 0
      %p79 = por %p77, %p78
      %s81 = sadd.s32 %s80, 1
      %p84 = scmp.eq.s32.totalorder %s20, 1
      %p85 = scmp.ne.s32.totalorder %s80, %s82
      %p86 = scmp.eq.s32.totalorder %s20, 0
      %p87 = por %p85, %p86
      %p88 = scmp.ne.s32.totalorder %s80, %s82
      %p89 = scmp.eq.s32.totalorder %s25, 1
      %p90 = por %p88, %p89
      %p91 = scmp.ne.s32.totalorder %s82, %s83
      %p92 = scmp.eq.s32.totalorder %s25, 0
      %p93 = por %p91, %p92
      %p94 = scmp.ne.s32.totalorder %s82, %s83
      %p95 = scmp.eq.s32.totalorder %s26, 1
      %p96 = por %p94, %p95
      %p98 = scmp.ne.s32.totalorder %s83, %s97
      %p99 = scmp.eq.s32.totalorder %s26, 0
      %p100 = por %p98, %p99
      %s102 = sadd.s32 %s101, 1
      %p105 = scmp.eq.s32.totalorder %s20, 1
      %p106 = scmp.ne.s32.totalorder %s101, %s103
      %p107 = scmp.eq.s32.totalorder %s20, 0
      %p108 = por %p106, %p107
      %p109 = scmp.ne.s32.totalorder %s101, %s103
      %p110 = scmp.eq.s32.totalorder %s25, 1
      %p111 = por %p109, %p110
      %p112 = scmp.ne.s32.totalorder %s103, %s104
      %p113 = scmp.eq.s32.totalorder %s25, 0
      %p114 = por %p112, %p113
      %p115 = scmp.ne.s32.totalorder %s103, %s104
      %p116 = scmp.eq.s32.totalorder %s26, 1
      %p117 = por %p115, %p116
      %p119 = scmp.ne.s32.totalorder %s104, %s118
      %p120 = scmp.eq.s32.totalorder %s26, 0
      %p121 = por %p119, %p120
      %s123 = sadd.s32 %s122, 1
      %p126 = scmp.eq.s32.totalorder %s20, 1
      %p127 = scmp.ne.s32.totalorder %s122, %s124
      %p128 = scmp.eq.s32.totalorder %s20, 0
      %p129 = por %p127, %p128
      %p130 = scmp.ne.s32.totalorder %s122, %s124
      %p131 = scmp.eq.s32.totalorder %s25, 1
      %p132 = por %p130, %p131
      %p133 = scmp.ne.s32.totalorder %s124, %s125
      %p134 = scmp.eq.s32.totalorder %s25, 0
      %p135 = por %p133, %p134
      %p136 = scmp.ne.s32.totalorder %s124, %s125
      %p137 = scmp.eq.s32.totalorder %s26, 1
      %p138 = por %p136, %p137
      %p140 = scmp.ne.s32.totalorder %s125, %s139
      %p141 = scmp.eq.s32.totalorder %s26, 0
      %p142 = por %p140, %p141
      %s144 = sadd.s32 %s143, 1
      %p147 = scmp.eq.s32.totalorder %s20, 1
      %p148 = scmp.ne.s32.totalorder %s143, %s145
      %p149 = scmp.eq.s32.totalorder %s20, 0
      %p150 = por %p148, %p149
      %p151 = scmp.ne.s32.totalorder %s143, %s145
      %p152 = scmp.eq.s32.totalorder %s25, 1
      %p153 = por %p151, %p152
      %p154 = scmp.ne.s32.totalorder %s145, %s146
      %p155 = scmp.eq.s32.totalorder %s25, 0
      %p156 = por %p154, %p155
      %p157 = scmp.ne.s32.totalorder %s145, %s146
      %p158 = scmp.eq.s32.totalorder %s26, 1
      %p159 = por %p157, %p158
      %p161 = scmp.ne.s32.totalorder %s146, %s160
      %p162 = scmp.eq.s32.totalorder %s26, 0
      %p163 = por %p161, %p162
      %s165 = sadd.s32 %s164, 1
      %p168 = scmp.eq.s32.totalorder %s20, 1
      %p169 = scmp.ne.s32.totalorder %s164, %s166
      %p170 = scmp.eq.s32.totalorder %s20, 0
      %p171 = por %p169, %p170
      %p172 = scmp.ne.s32.totalorder %s164, %s166
      %p173 = scmp.eq.s32.totalorder %s25, 1
      %p174 = por %p172, %p173
      %p175 = scmp.ne.s32.totalorder %s166, %s167
      %p176 = scmp.eq.s32.totalorder %s25, 0
      %p177 = por %p175, %p176
      %p178 = scmp.ne.s32.totalorder %s166, %s167
      %p179 = scmp.eq.s32.totalorder %s26, 1
      %p180 = por %p178, %p179
      %p182 = scmp.ne.s32.totalorder %s167, %s181
      %p183 = scmp.eq.s32.totalorder %s26, 0
      %p184 = por %p182, %p183
      %s186 = sadd.s32 %s185, 1
      %p189 = scmp.eq.s32.totalorder %s20, 1
      %p190 = scmp.ne.s32.totalorder %s185, %s187
      %p191 = scmp.eq.s32.totalorder %s20, 0
      %p192 = por %p190, %p191
      %p193 = scmp.ne.s32.totalorder %s185, %s187
      %p194 = scmp.eq.s32.totalorder %s25, 1
      %p195 = por %p193, %p194
      %p196 = scmp.ne.s32.totalorder %s187, %s188
      %p197 = scmp.eq.s32.totalorder %s25, 0
      %p198 = por %p196, %p197
      %p199 = scmp.ne.s32.totalorder %s187, %s188
      %p200 = scmp.eq.s32.totalorder %s26, 1
      %p201 = por %p199, %p200
      %p203 = scmp.ne.s32.totalorder %s188, %s202
      %p204 = scmp.eq.s32.totalorder %s26, 0
      %p205 = por %p203, %p204
      %s207 = sadd.s32 %s206, 1
      %p210 = scmp.eq.s32.totalorder %s20, 1
      %p211 = scmp.ne.s32.totalorder %s206, %s208
      %p212 = scmp.eq.s32.totalorder %s20, 0
      %p213 = por %p211, %p212
      %p214 = scmp.ne.s32.totalorder %s206, %s208
      %p215 = scmp.eq.s32.totalorder %s25, 1
      %p216 = por %p214, %p215
      %p217 = scmp.ne.s32.totalorder %s208, %s209
      %p218 = scmp.eq.s32.totalorder %s25, 0
      %p219 = por %p217, %p218
      %p220 = scmp.ne.s32.totalorder %s208, %s209
      %p221 = scmp.eq.s32.totalorder %s26, 1
      %p222 = por %p220, %p221
      %p224 = scmp.ne.s32.totalorder %s209, %s223
      %p225 = scmp.eq.s32.totalorder %s26, 0
      %p226 = por %p224, %p225
      %s227 = ssub.s32 %s20, %s27
      %p228 = scmp.eq.s32.totalorder %s227, 0
      %s230 = sadd.s32 %s229, 1
      %s231 = scalar_select %p228, %s229, %s230
      %p234 = pneg %p228
      %p235 = scmp.eq.s32.totalorder %s20, 1
      %p236 = por %p234, %p235
      %p237 = scmp.ne.s32.totalorder %s229, %s232
      %p238 = scmp.eq.s32.totalorder %s20, 0
      %p239 = por %p237, %p238
      %p240 = scmp.ne.s32.totalorder %s229, %s232
      %p241 = scmp.eq.s32.totalorder %s25, 1
      %p242 = por %p240, %p241
      %p243 = scmp.ne.s32.totalorder %s232, %s233
      %p244 = scmp.eq.s32.totalorder %s25, 0
      %p245 = por %p243, %p244
      %p246 = scmp.ne.s32.totalorder %s232, %s233
      %p247 = scmp.eq.s32.totalorder %s26, 1
      %p248 = por %p246, %p247
      %p250 = scmp.ne.s32.totalorder %s233, %s249
      %p251 = scmp.eq.s32.totalorder %s26, 0
      %p252 = por %p250, %p251
      %s253 = ssub.s32 %s20, %s27
      %p254 = scmp.eq.s32.totalorder %s253, 0
      %s256 = sadd.s32 %s255, 1
      %s257 = scalar_select %p254, %s255, %s256
      %p260 = pneg %p254
      %p261 = scmp.eq.s32.totalorder %s20, 1
      %p262 = por %p260, %p261
      %p263 = scmp.ne.s32.totalorder %s255, %s258
      %p264 = scmp.eq.s32.totalorder %s20, 0
      %p265 = por %p263, %p264
      %p266 = scmp.ne.s32.totalorder %s255, %s258
      %p267 = scmp.eq.s32.totalorder %s25, 1
      %p268 = por %p266, %p267
      %p269 = scmp.ne.s32.totalorder %s258, %s259
      %p270 = scmp.eq.s32.totalorder %s25, 0
      %p271 = por %p269, %p270
      %p272 = scmp.ne.s32.totalorder %s258, %s259
      %p273 = scmp.eq.s32.totalorder %s26, 1
      %p274 = por %p272, %p273
      %p276 = scmp.ne.s32.totalorder %s259, %s275
      %p277 = scmp.eq.s32.totalorder %s26, 0
      %p278 = por %p276, %p277
      %p279 = scmp.le.s32.totalorder 1, %s20
      %p280 = scmp.lt.s32.totalorder %s20, 3
      %p281 = pnand %p279, %p280
      %p282 = pneg %p281
      // Predicated region
      $region9: #{market_regime_forward.1} parent=5 // pred_check
        _
      $region10: #{market_regime_forward.1} parent=5 // pred_check_branch
        %284 = sbr.rel (%p281) target = $region12
      $region11: #{market_regime_forward.1} parent=5 // pred_region
        %s285 = ssub.s32 %s20, 1
        // Predicated region
        $region13: #{market_regime_forward.1} parent=11 // pred_check
          %p286 = pneg %p93
        $region14: #{market_regime_forward.1} parent=11 // pred_check_branch
          %288 = sbr.rel (%p286) target = $region16
        $region15: #{market_regime_forward.1} parent=11 // pred_region
          _
        $region16: #{market_regime_forward.1} parent=11 // pred_fallthru
          _
        // Predicated region
        $region17: #{market_regime_forward.1} parent=11 // pred_check
          %p289 = pneg %p114
        $region18: #{market_regime_forward.1} parent=11 // pred_check_branch
          %291 = sbr.rel (%p289) target = $region20
        $region19: #{market_regime_forward.1} parent=11 // pred_region
          _
        $region20: #{market_regime_forward.1} parent=11 // pred_fallthru
          _
        // Predicated region
        $region21: #{market_regime_forward.1} parent=11 // pred_check
          %p292 = pneg %p135
        $region22: #{market_regime_forward.1} parent=11 // pred_check_branch
          %294 = sbr.rel (%p292) target = $region24
        $region23: #{market_regime_forward.1} parent=11 // pred_region
          _
        $region24: #{market_regime_forward.1} parent=11 // pred_fallthru
          _
        // Predicated region
        $region25: #{market_regime_forward.1} parent=11 // pred_check
          %p295 = pneg %p156
        $region26: #{market_regime_forward.1} parent=11 // pred_check_branch
          %297 = sbr.rel (%p295) target = $region28
        $region27: #{market_regime_forward.1} parent=11 // pred_region
          _
        $region28: #{market_regime_forward.1} parent=11 // pred_fallthru
          _
        // Predicated region
        $region29: #{market_regime_forward.1} parent=11 // pred_check
          %p298 = pneg %p177
        $region30: #{market_regime_forward.1} parent=11 // pred_check_branch
          %300 = sbr.rel (%p298) target = $region32
        $region31: #{market_regime_forward.1} parent=11 // pred_region
          _
        $region32: #{market_regime_forward.1} parent=11 // pred_fallthru
          _
        // Predicated region
        $region33: #{market_regime_forward.1} parent=11 // pred_check
          %p301 = pneg %p198
        $region34: #{market_regime_forward.1} parent=11 // pred_check_branch
          %303 = sbr.rel (%p301) target = $region36
        $region35: #{market_regime_forward.1} parent=11 // pred_region
          _
        $region36: #{market_regime_forward.1} parent=11 // pred_fallthru
          _
        // Predicated region
        $region37: #{market_regime_forward.1} parent=11 // pred_check
          %p304 = pneg %p219
        $region38: #{market_regime_forward.1} parent=11 // pred_check_branch
          %306 = sbr.rel (%p304) target = $region40
        $region39: #{market_regime_forward.1} parent=11 // pred_region
          _
        $region40: #{market_regime_forward.1} parent=11 // pred_fallthru
          _
      $region12: #{market_regime_forward.1} parent=5 // pred_fallthru
        _
      %p307 = scmp.lt.s32.totalorder %s20, 2
      // Predicated region
      $region41: #{market_regime_forward.1} parent=5 // pred_check
        %p308 = pneg %p307
      $region42: #{market_regime_forward.1} parent=5 // pred_check_branch
        %310 = sbr.rel (%p308) target = $region44
      $region43: #{market_regime_forward.1} parent=5 // pred_region
        // Predicated region
        $region45: #{market_regime_forward.1} parent=43 // pred_check
          %p311 = pneg %p40
        $region46: #{market_regime_forward.1} parent=43 // pred_check_branch
          %313 = sbr.rel (%p311) target = $region48
        $region47: #{market_regime_forward.1} parent=43 // pred_region
          %s314 = smul.u32 4, %s20
          %p315 = scmp.lt.s32.totalorder %s314, 7
          %s316 = scalar_select %p315, %s314, 7
          %s317 = smul.addr %s316, 8
          %s318 = scalar_lea.vmem %s0, %s317
          %s319 = smul.u32 4, %s20
        $region48: #{market_regime_forward.1} parent=43 // pred_fallthru
          _
        // Predicated region
        $region49: #{market_regime_forward.1} parent=43 // pred_check
          %p320 = pneg %p66
        $region50: #{market_regime_forward.1} parent=43 // pred_check_branch
          %322 = sbr.rel (%p320) target = $region52
        $region51: #{market_regime_forward.1} parent=43 // pred_region
          %s323 = smul.u32 4, %s20
          %p324 = scmp.lt.s32.totalorder %s323, 7
          %s325 = scalar_select %p324, %s323, 7
          %s326 = smul.addr %s325, 8
          %s327 = scalar_lea.vmem %s1, %s326
          %s328 = smul.u32 4, %s20
        $region52: #{market_regime_forward.1} parent=43 // pred_fallthru
          _
      $region44: #{market_regime_forward.1} parent=5 // pred_fallthru
        _
      %p329 = scmp.le.s32.totalorder 1, %s20
      %p330 = scmp.lt.s32.totalorder %s20, 3
      %p331 = pnand %p329, %p330
      %p332 = pneg %p331
      // Predicated region
      $region53: #{market_regime_forward.1} parent=5 // pred_check
        _
      $region54: #{market_regime_forward.1} parent=5 // pred_check_branch
        %334 = sbr.rel (%p331) target = $region56
      $region55: #{market_regime_forward.1} parent=5 // pred_region
        %s335 = ssub.s32 %s20, 1
        %s336 = smul.u32 4, %s25
        %p337 = scmp.lt.s32.totalorder %s336, 7
        %s338 = scalar_select %p337, %s336, 7
        %s339 = smul.addr %s338, 8
        %s340 = scalar_lea.vmem %s0, %s339
        %p341 = pneg %p46
        %p342 = pneg %p43
        %s343 = smul.u32 4, %s25
        %p344 = scmp.lt.s32.totalorder %s343, 7
        %s345 = scalar_select %p344, %s343, 7
        %s346 = smul.addr %s345, 8
        %s347 = scalar_lea.vmem %s1, %s346
        %p348 = pneg %p72
        %p349 = pneg %p69
        %p350 = pneg %p93
        %p351 = pneg %p90
        %p352 = pneg %p114
        %p353 = pneg %p111
        %p354 = pneg %p135
        %p355 = pneg %p132
        %p356 = pneg %p156
        %p357 = pneg %p153
        %p358 = pneg %p177
        %p359 = pneg %p174
        %p360 = pneg %p198
        %p361 = pneg %p195
        %p362 = pneg %p219
        %p363 = pneg %p216
        %p364 = pneg %p245
        %p365 = pneg %p242
        %s366 = sand.u32 %s232, 1
        %s367 = scalar_lea.sflag [#allocation3], %s366
        %s368 = sand.u32 %s232, 1
        %s369 = smul.addr %s368, 32
        %s370 = scalar_lea.vmem [#allocation2], %s369
        %p371 = pneg %p271
        %p372 = pneg %p268
        %s373 = smul.u32 4, %s25
        %p374 = scmp.lt.s32.totalorder %s373, 7
        %s375 = scalar_select %p374, %s373, 7
        %s376 = smul.addr %s375, 8
        %s377 = scalar_lea.vmem %s10, %s376
        %s378 = smul.u32 4, %s25
        %p379 = scmp.lt.s32.totalorder %s378, 7
        %s380 = scalar_select %p379, %s378, 7
        %s381 = smul.addr %s380, 8
        %s382 = scalar_lea.vmem %s0, %s381
        %s383 = smul.u32 4, %s25
        %s384 = smul.u32 4, %s25
        %p385 = scmp.lt.s32.totalorder %s384, 7
        %s386 = scalar_select %p385, %s384, 7
        %s387 = smul.addr %s386, 8
        %s388 = scalar_lea.vmem %s1, %s387
        %s389 = smul.u32 4, %s25
        %s390 = smul.u32 4, %s25
        %s391 = smul.u32 4, %s25
        %p392 = scmp.lt.s32.totalorder %s391, 7
        %s393 = scalar_select %p392, %s391, 7
        %s394 = smul.addr %s393, 8
        %s395 = scalar_lea.vmem %s10, %s394
        %s396 = smul.u32 4, %s25
        %v398 = vld [vmem:[%s382] sm:$0xff]
        %v399 = vld [vmem:[%s382 + $0x8] sm:$0xff]
        %v400 = vld [vmem:[%s382 + $0x10] sm:$0xff]
        %v401 = vld [vmem:[%s382 + $0x18] sm:$0xff]
        %v402 = vpack.c.bf16 %v399, %v398
        %v403 = vpack.c.bf16 %v401, %v400
        %v404 = vld [vmem:[%s388] sm:$0xff]
        %v405 = vld [vmem:[%s388 + $0x8] sm:$0xff]
        %v406 = vld [vmem:[%s388 + $0x10] sm:$0xff]
        %v407 = vld [vmem:[%s388 + $0x18] sm:$0xff]
        %v408 = vld [vmem:[%s8] sm:$0xff]
        %v409 = vld [vmem:[%s2] sm:$0xf]
        %v410 = vld [vmem:[%s2 + $0x4] sm:$0xf]
        %v411 = vld [vmem:[%s2 + $0x8] sm:$0xf]
        %v412 = vld [vmem:[%s2 + $0xc] sm:$0xf]
        %v413 = vld [vmem:[%s2 + $0x10] sm:$0xf]
        %v414 = vld [vmem:[%s2 + $0x14] sm:$0xf]
        %v415 = vld [vmem:[%s2 + $0x18] sm:$0xf]
        %v416 = vld [vmem:[%s2 + $0x1c] sm:$0xf]
        %v417 = vld [vmem:[%s2 + $0x20] sm:$0xf]
        %v418 = vld [vmem:[%s2 + $0x24] sm:$0xf]
        %v419 = vld [vmem:[%s2 + $0x28] sm:$0xf]
        %v420 = vld [vmem:[%s2 + $0x2c] sm:$0xf]
        %v421 = vld [vmem:[%s2 + $0x30] sm:$0xf]
        %v422 = vld [vmem:[%s2 + $0x34] sm:$0xf]
        %v423 = vld [vmem:[%s2 + $0x38] sm:$0xf]
        %v424 = vld [vmem:[%s2 + $0x3c] sm:$0xf]
        %v425 = vlaneseq
        %v426 = vshrl.u32 %v425, 7
        %v427 = vsub.s32 0, %v426
        %v428 = vrot.slane %v408, %v427
        %v445 = vunpack.c.l.b16 %v409
        %v446 = vunpack.c.l.b16 %v410
        %v447 = vunpack.c.l.b16 %v411
        %v448 = vunpack.c.l.b16 %v412
        %v449 = vunpack.c.l.b16 %v413
        %v450 = vunpack.c.l.b16 %v414
        %v451 = vunpack.c.l.b16 %v415
        %v452 = vunpack.c.l.b16 %v416
        %v453 = vunpack.c.l.b16 %v417
        %v454 = vunpack.c.l.b16 %v418
        %v455 = vunpack.c.l.b16 %v419
        %v456 = vunpack.c.l.b16 %v420
        %v457 = vunpack.c.l.b16 %v421
        %v458 = vunpack.c.l.b16 %v422
        %v459 = vunpack.c.l.b16 %v423
        %v460 = vunpack.c.l.b16 %v424
        %v461 = vpack.c.b16 %v446, %v445
        %v462 = vpack.c.b16 %v448, %v447
        %v463 = vpack.c.b16 %v450, %v449
        %v464 = vpack.c.b16 %v452, %v451
        %v465 = vpack.c.b16 %v454, %v453
        %v466 = vpack.c.b16 %v456, %v455
        %v467 = vpack.c.b16 %v458, %v457
        %v468 = vpack.c.b16 %v460, %v459
        %477 = vmatprep.subr.bf16.mxu0 0
        %478 = vmatpush1.bf16.msra.mxu0 %v461
        %479 = vmatprep.subr.bf16.mxu0 0
        %480 = vmatpush1.bf16.msra.mxu0 %v462
        %481 = vmatprep.subr.bf16.mxu0 0
        %482 = vmatpush1.bf16.msra.mxu0 %v463
        %483 = vmatprep.subr.bf16.mxu0 0
        %484 = vmatpush1.bf16.msra.mxu0 %v464
        %485 = vmatprep.subr.bf16.mxu0 0
        %486 = vmatpush1.bf16.msra.mxu0 %v465
        %487 = vmatprep.subr.bf16.mxu0 0
        %488 = vmatpush1.bf16.msra.mxu0 %v466
        %489 = vmatprep.subr.bf16.mxu0 0
        %490 = vmatpush1.bf16.msra.mxu0 %v467
        %491 = vmatprep.subr.bf16.mxu0 0
        %492 = vmatpush1.bf16.msra.mxu0 %v468
        %493 = vmatprep.subr.bf16.mxu0 0
        %494 = vmatpush1.bf16.msra.mxu0 0
        %495 = vmatprep.subr.bf16.mxu0 0
        %496 = vmatpush1.bf16.msra.mxu0 0
        %497 = vmatprep.subr.bf16.mxu0 0
        %498 = vmatpush1.bf16.msra.mxu0 0
        %499 = vmatprep.subr.bf16.mxu0 0
        %500 = vmatpush1.bf16.msra.mxu0 0
        %501 = vmatprep.subr.bf16.mxu0 0
        %502 = vmatpush1.bf16.msra.mxu0 0
        %503 = vmatprep.subr.bf16.mxu0 0
        %504 = vmatpush1.bf16.msra.mxu0 0
        %505 = vmatprep.subr.bf16.mxu0 0
        %506 = vmatpush1.bf16.msra.mxu0 0
        %507 = vmatprep.subr.bf16.mxu0 0
        %508 = vmatpush1.bf16.msra.mxu0 0
        %509 = vmatprep.mubr.bf16.mxu0 0
        %510 = vmatmul.mubr.bf16.gmra.mrb[0].mxu0 %v402
        %v511 = vpop.f32.mrb[0].mxu0
        %v512 = vadd.f32 %v428, %v511
        %v513 = vpop.f32.mrb[0].mxu0
        %v514 = vpop.f32.mrb[0].mxu0
        %v515 = vadd.f32 %v428, %v514
        %v516 = vpop.f32.mrb[0].mxu0
        %517 = vmatprep.mubr.bf16.mxu0 0
        %518 = vmatmul.mubr.bf16.gmra.mrb[0].mxu0 %v403
        %v519 = vpop.f32.mrb[0].mxu0
        %v520 = vadd.f32 %v428, %v519
        %v521 = vpop.f32.mrb[0].mxu0
        %v522 = vpop.f32.mrb[0].mxu0
        %v523 = vadd.f32 %v428, %v522
        %v524 = vpop.f32.mrb[0].mxu0
        %525 = vdwg.mxu0
        %v526 = vmax.f32 %v512, 0.0
        %v527 = vmax.f32 %v515, 0.0
        %v528 = vmax.f32 %v520, 0.0
        %v529 = vmax.f32 %v523, 0.0
        %v530 = vpack.c.bf16 %v527, %v526
        %v531 = vpack.c.bf16 %v529, %v528
        %v532 = vld [vmem:[%s3] sm:$0xf]
        %v533 = vld [vmem:[%s3 + $0x4] sm:$0xf]
        %v534 = vld [vmem:[%s3 + $0x8] sm:$0xf]
        %v535 = vld [vmem:[%s3 + $0xc] sm:$0xf]
        %v536 = vld [vmem:[%s3 + $0x10] sm:$0xf]
        %v537 = vld [vmem:[%s3 + $0x14] sm:$0xf]
        %v538 = vld [vmem:[%s3 + $0x18] sm:$0xf]
        %v539 = vld [vmem:[%s3 + $0x1c] sm:$0xf]
        %v540 = vlaneseq
        %v541 = vshrl.u32 %v540, 7
        %v542 = vsub.s32 1, %v541
        %v543 = vrot.slane %v408, %v542
        %v552 = vunpack.c.l.b16 %v532
        %v553 = vunpack.c.l.b16 %v533
        %v554 = vunpack.c.l.b16 %v534
        %v555 = vunpack.c.l.b16 %v535
        %v556 = vunpack.c.l.b16 %v536
        %v557 = vunpack.c.l.b16 %v537
        %v558 = vunpack.c.l.b16 %v538
        %v559 = vunpack.c.l.b16 %v539
        %v560 = vpack.c.b16 %v553, %v552
        %v561 = vpack.c.b16 %v555, %v554
        %v562 = vpack.c.b16 %v557, %v556
        %v563 = vpack.c.b16 %v559, %v558
        %vm568 = vcmask 523264
        %v570 = vsel %vm568, %v530, 0
        %v573 = vsel %vm568, %v531, 0
        %575 = vmatprep.subr.bf16.mxu0 0
        %576 = vmatpush1.bf16.msra.mxu0 %v560
        %577 = vmatprep.subr.bf16.mxu0 0
        %578 = vmatpush1.bf16.msra.mxu0 %v561
        %579 = vmatprep.subr.bf16.mxu0 0
        %580 = vmatpush1.bf16.msra.mxu0 %v562
        %581 = vmatprep.subr.bf16.mxu0 0
        %582 = vmatpush1.bf16.msra.mxu0 %v563
        %583 = vmatprep.subr.bf16.mxu0 0
        %584 = vmatpush1.bf16.msra.mxu0 0
        %585 = vmatprep.subr.bf16.mxu0 0
        %586 = vmatpush1.bf16.msra.mxu0 0
        %587 = vmatprep.subr.bf16.mxu0 0
        %588 = vmatpush1.bf16.msra.mxu0 0
        %589 = vmatprep.subr.bf16.mxu0 0
        %590 = vmatpush1.bf16.msra.mxu0 0
        %591 = vmatprep.subr.bf16.mxu0 0
        %592 = vmatpush1.bf16.msra.mxu0 0
        %593 = vmatprep.subr.bf16.mxu0 0
        %594 = vmatpush1.bf16.msra.mxu0 0
        %595 = vmatprep.subr.bf16.mxu0 0
        %596 = vmatpush1.bf16.msra.mxu0 0
        %597 = vmatprep.subr.bf16.mxu0 0
        %598 = vmatpush1.bf16.msra.mxu0 0
        %599 = vmatprep.subr.bf16.mxu0 0
        %600 = vmatpush1.bf16.msra.mxu0 0
        %601 = vmatprep.subr.bf16.mxu0 0
        %602 = vmatpush1.bf16.msra.mxu0 0
        %603 = vmatprep.subr.bf16.mxu0 0
        %604 = vmatpush1.bf16.msra.mxu0 0
        %605 = vmatprep.subr.bf16.mxu0 0
        %606 = vmatpush1.bf16.msra.mxu0 0
        %607 = vmatprep.mubr.bf16.mxu0 0
        %608 = vmatmul.mubr.bf16.gmra.mrb[0].mxu0 %v570
        %v609 = vpop.f32.mrb[0].mxu0
        %v610 = vadd.f32 %v543, %v609
        %v611 = vpop.f32.mrb[0].mxu0
        %v612 = vpop.f32.mrb[0].mxu0
        %v613 = vadd.f32 %v543, %v612
        %v614 = vpop.f32.mrb[0].mxu0
        %615 = vmatprep.mubr.bf16.mxu0 0
        %616 = vmatmul.mubr.bf16.gmra.mrb[0].mxu0 %v573
        %v617 = vpop.f32.mrb[0].mxu0
        %v618 = vadd.f32 %v543, %v617
        %v619 = vpop.f32.mrb[0].mxu0
        %v620 = vpop.f32.mrb[0].mxu0
        %v621 = vadd.f32 %v543, %v620
        %v622 = vpop.f32.mrb[0].mxu0
        %623 = vdwg.mxu0
        %v624 = vmax.f32 %v610, 0.0
        %v625 = vmax.f32 %v613, 0.0
        %v626 = vmax.f32 %v618, 0.0
        %v627 = vmax.f32 %v621, 0.0
        %v628 = vpack.c.bf16 %v625, %v624
        %v629 = vpack.c.bf16 %v627, %v626
        %v630 = vld [vmem:[%s4] sm:$0xf]
        %v631 = vld [vmem:[%s4 + $0x4] sm:$0xf]
        %v632 = vld [vmem:[%s4 + $0x8] sm:$0xf]
        %v633 = vld [vmem:[%s4 + $0xc] sm:$0xf]
        %v634 = vlaneseq
        %v635 = vshrl.u32 %v634, 7
        %v636 = vsub.s32 2, %v635
        %v637 = vrot.slane %v408, %v636
        %v642 = vunpack.c.l.b16 %v630
        %v643 = vunpack.c.l.b16 %v631
        %v644 = vunpack.c.l.b16 %v632
        %v645 = vunpack.c.l.b16 %v633
        %v646 = vpack.c.b16 %v643, %v642
        %v647 = vpack.c.b16 %v645, %v644
        %vm650 = vcmask 261120
        %v652 = vsel %vm650, %v628, 0
        %v655 = vsel %vm650, %v629, 0
        %657 = vmatprep.subr.bf16.mxu0 0
        %658 = vmatpush1.bf16.msra.mxu0 %v646
        %659 = vmatprep.subr.bf16.mxu0 0
        %660 = vmatpush1.bf16.msra.mxu0 %v647
        %661 = vmatprep.subr.bf16.mxu0 0
        %662 = vmatpush1.bf16.msra.mxu0 0
        %663 = vmatprep.subr.bf16.mxu0 0
        %664 = vmatpush1.bf16.msra.mxu0 0
        %665 = vmatprep.subr.bf16.mxu0 0
        %666 = vmatpush1.bf16.msra.mxu0 0
        %667 = vmatprep.subr.bf16.mxu0 0
        %668 = vmatpush1.bf16.msra.mxu0 0
        %669 = vmatprep.subr.bf16.mxu0 0
        %670 = vmatpush1.bf16.msra.mxu0 0
        %671 = vmatprep.subr.bf16.mxu0 0
        %672 = vmatpush1.bf16.msra.mxu0 0
        %673 = vmatprep.subr.bf16.mxu0 0
        %674 = vmatpush1.bf16.msra.mxu0 0
        %675 = vmatprep.subr.bf16.mxu0 0
        %676 = vmatpush1.bf16.msra.mxu0 0
        %677 = vmatprep.subr.bf16.mxu0 0
        %678 = vmatpush1.bf16.msra.mxu0 0
        %679 = vmatprep.subr.bf16.mxu0 0
        %680 = vmatpush1.bf16.msra.mxu0 0
        %681 = vmatprep.subr.bf16.mxu0 0
        %682 = vmatpush1.bf16.msra.mxu0 0
        %683 = vmatprep.subr.bf16.mxu0 0
        %684 = vmatpush1.bf16.msra.mxu0 0
        %685 = vmatprep.subr.bf16.mxu0 0
        %686 = vmatpush1.bf16.msra.mxu0 0
        %687 = vmatprep.subr.bf16.mxu0 0
        %688 = vmatpush1.bf16.msra.mxu0 0
        %689 = vmatprep.mubr.bf16.mxu0 0
        %690 = vmatmul.mubr.bf16.gmra.mrb[0].mxu0 %v652
        %v691 = vpop.f32.mrb[0].mxu0
        %v692 = vadd.f32 %v637, %v691
        %v693 = vpop.f32.mrb[0].mxu0
        %v694 = vpop.f32.mrb[0].mxu0
        %v695 = vadd.f32 %v637, %v694
        %v696 = vpop.f32.mrb[0].mxu0
        %697 = vmatprep.mubr.bf16.mxu0 0
        %698 = vmatmul.mubr.bf16.gmra.mrb[0].mxu0 %v655
        %v699 = vpop.f32.mrb[0].mxu0
        %v700 = vadd.f32 %v637, %v699
        %v701 = vpop.f32.mrb[0].mxu0
        %v702 = vpop.f32.mrb[0].mxu0
        %v703 = vadd.f32 %v637, %v702
        %v704 = vpop.f32.mrb[0].mxu0
        %705 = vdwg.mxu0
        %v706 = vmul.f32 %v692, 0.5
        %v707 = vmul.f32 %v695, 0.5
        %v708 = vmul.f32 %v700, 0.5
        %v709 = vmul.f32 %v703, 0.5
        %v710 = vmul.f32 %v706, 1.442695
        %v711 = vpow.pop %v710
        %v712 = vmul.f32 %v707, 1.442695
        %v713 = vpow.pop %v712
        %v714 = vmul.f32 %v708, 1.442695
        %v715 = vpow.pop %v714
        %v716 = vmul.f32 %v709, 1.442695
        %v717 = vpow.pop %v716
        %722 = vrot.lane.b32.xlu0 %v711, 112
        %v723 = vpop.permute.xlu0 %722
        %724 = vrot.lane.b32.xlu0 %v713, 112
        %v725 = vpop.permute.xlu0 %724
        %726 = vrot.lane.b32.xlu0 %v715, 112
        %v727 = vpop.permute.xlu0 %726
        %728 = vrot.lane.b32.xlu0 %v717, 112
        %v729 = vpop.permute.xlu0 %728
        %v734 = vmul.f32 %v404, %v723
        %v735 = vmul.f32 %v405, %v725
        %v736 = vmul.f32 %v406, %v727
        %v737 = vmul.f32 %v407, %v729
        %v738 = vadd.f32 %v692, %v734
        %v739 = vadd.f32 %v695, %v735
        %v740 = vadd.f32 %v700, %v736
        %v741 = vadd.f32 %v703, %v737
        %v742 = vpack.c.bf16 %v739, %v738
        %v743 = vpack.c.bf16 %v741, %v740
        %v744 = vld [vmem:[%s5] sm:$0xf]
        %v745 = vld [vmem:[%s5 + $0x4] sm:$0xf]
        %v746 = vlaneseq
        %v747 = vshrl.u32 %v746, 7
        %v748 = vsub.s32 3, %v747
        %v749 = vrot.slane %v408, %v748
        %v752 = vunpack.c.l.b16 %v744
        %v753 = vunpack.c.l.b16 %v745
        %v754 = vpack.c.b16 %v753, %v752
        %vm756 = vcmask 130048
        %v758 = vsel %vm756, %v742, 0
        %v761 = vsel %vm756, %v743, 0
        %763 = vmatprep.subr.bf16.mxu0 0
        %764 = vmatpush1.bf16.msra.mxu0 %v754
        %765 = vmatprep.subr.bf16.mxu0 0
        %766 = vmatpush1.bf16.msra.mxu0 0
        %767 = vmatprep.subr.bf16.mxu0 0
        %768 = vmatpush1.bf16.msra.mxu0 0
        %769 = vmatprep.subr.bf16.mxu0 0
        %770 = vmatpush1.bf16.msra.mxu0 0
        %771 = vmatprep.subr.bf16.mxu0 0
        %772 = vmatpush1.bf16.msra.mxu0 0
        %773 = vmatprep.subr.bf16.mxu0 0
        %774 = vmatpush1.bf16.msra.mxu0 0
        %775 = vmatprep.subr.bf16.mxu0 0
        %776 = vmatpush1.bf16.msra.mxu0 0
        %777 = vmatprep.subr.bf16.mxu0 0
        %778 = vmatpush1.bf16.msra.mxu0 0
        %779 = vmatprep.subr.bf16.mxu0 0
        %780 = vmatpush1.bf16.msra.mxu0 0
        %781 = vmatprep.subr.bf16.mxu0 0
        %782 = vmatpush1.bf16.msra.mxu0 0
        %783 = vmatprep.subr.bf16.mxu0 0
        %784 = vmatpush1.bf16.msra.mxu0 0
        %785 = vmatprep.subr.bf16.mxu0 0
        %786 = vmatpush1.bf16.msra.mxu0 0
        %787 = vmatprep.subr.bf16.mxu0 0
        %788 = vmatpush1.bf16.msra.mxu0 0
        %789 = vmatprep.subr.bf16.mxu0 0
        %790 = vmatpush1.bf16.msra.mxu0 0
        %791 = vmatprep.subr.bf16.mxu0 0
        %792 = vmatpush1.bf16.msra.mxu0 0
        %793 = vmatprep.subr.bf16.mxu0 0
        %794 = vmatpush1.bf16.msra.mxu0 0
        %795 = vmatprep.mubr.bf16.mxu0 0
        %796 = vmatmul.mubr.bf16.gmra.mrb[0].mxu0 %v758
        %v797 = vpop.f32.mrb[0].mxu0
        %v798 = vadd.f32 %v749, %v797
        %v799 = vpop.f32.mrb[0].mxu0
        %v800 = vpop.f32.mrb[0].mxu0
        %v801 = vadd.f32 %v749, %v800
        %v802 = vpop.f32.mrb[0].mxu0
        %803 = vmatprep.mubr.bf16.mxu0 0
        %804 = vmatmul.mubr.bf16.gmra.mrb[0].mxu0 %v761
        %v805 = vpop.f32.mrb[0].mxu0
        %v806 = vadd.f32 %v749, %v805
        %v807 = vpop.f32.mrb[0].mxu0
        %v808 = vpop.f32.mrb[0].mxu0
        %v809 = vadd.f32 %v749, %v808
        %v810 = vpop.f32.mrb[0].mxu0
        %811 = vdwg.mxu0
        %v812 = vmax.f32 %v798, 0.0
        %v813 = vmax.f32 %v801, 0.0
        %v814 = vmax.f32 %v806, 0.0
        %v815 = vmax.f32 %v809, 0.0
        %v816 = vpack.c.bf16 %v813, %v812
        %v817 = vpack.c.bf16 %v815, %v814
        %v818 = vld [vmem:[%s6] sm:$0xf]
        %v819 = vld [vmem:[%s6 + $0x4] sm:$0xf]
        %v820 = vld [vmem:[%s6 + $0x8] sm:$0xf]
        %v821 = vld [vmem:[%s6 + $0xc] sm:$0xf]
        %v822 = vld [vmem:[%s6 + $0x10] sm:$0xf]
        %v823 = vld [vmem:[%s6 + $0x14] sm:$0xf]
        %v824 = vld [vmem:[%s6 + $0x18] sm:$0xf]
        %v825 = vld [vmem:[%s6 + $0x1c] sm:$0xf]
        %v826 = vlaneseq
        %v827 = vshrl.u32 %v826, 7
        %v828 = vsub.s32 4, %v827
        %v829 = vrot.slane %v408, %v828
        %v838 = vunpack.c.l.b16 %v818
        %v839 = vunpack.c.l.b16 %v819
        %v840 = vunpack.c.l.b16 %v820
        %v841 = vunpack.c.l.b16 %v821
        %v842 = vunpack.c.l.b16 %v822
        %v843 = vunpack.c.l.b16 %v823
        %v844 = vunpack.c.l.b16 %v824
        %v845 = vunpack.c.l.b16 %v825
        %v846 = vpack.c.b16 %v839, %v838
        %v847 = vpack.c.b16 %v841, %v840
        %v848 = vpack.c.b16 %v843, %v842
        %v849 = vpack.c.b16 %v845, %v844
        %v855 = vsel %vm568, %v816, 0
        %v858 = vsel %vm568, %v817, 0
        %860 = vmatprep.subr.bf16.mxu0 0
        %861 = vmatpush1.bf16.msra.mxu0 %v846
        %862 = vmatprep.subr.bf16.mxu0 0
        %863 = vmatpush1.bf16.msra.mxu0 %v847
        %864 = vmatprep.subr.bf16.mxu0 0
        %865 = vmatpush1.bf16.msra.mxu0 %v848
        %866 = vmatprep.subr.bf16.mxu0 0
        %867 = vmatpush1.bf16.msra.mxu0 %v849
        %868 = vmatprep.subr.bf16.mxu0 0
        %869 = vmatpush1.bf16.msra.mxu0 0
        %870 = vmatprep.subr.bf16.mxu0 0
        %871 = vmatpush1.bf16.msra.mxu0 0
        %872 = vmatprep.subr.bf16.mxu0 0
        %873 = vmatpush1.bf16.msra.mxu0 0
        %874 = vmatprep.subr.bf16.mxu0 0
        %875 = vmatpush1.bf16.msra.mxu0 0
        %876 = vmatprep.subr.bf16.mxu0 0
        %877 = vmatpush1.bf16.msra.mxu0 0
        %878 = vmatprep.subr.bf16.mxu0 0
        %879 = vmatpush1.bf16.msra.mxu0 0
        %880 = vmatprep.subr.bf16.mxu0 0
        %881 = vmatpush1.bf16.msra.mxu0 0
        %882 = vmatprep.subr.bf16.mxu0 0
        %883 = vmatpush1.bf16.msra.mxu0 0
        %884 = vmatprep.subr.bf16.mxu0 0
        %885 = vmatpush1.bf16.msra.mxu0 0
        %886 = vmatprep.subr.bf16.mxu0 0
        %887 = vmatpush1.bf16.msra.mxu0 0
        %888 = vmatprep.subr.bf16.mxu0 0
        %889 = vmatpush1.bf16.msra.mxu0 0
        %890 = vmatprep.subr.bf16.mxu0 0
        %891 = vmatpush1.bf16.msra.mxu0 0
        %892 = vmatprep.mubr.bf16.mxu0 0
        %893 = vmatmul.mubr.bf16.gmra.mrb[0].mxu0 %v855
        %v894 = vpop.f32.mrb[0].mxu0
        %v895 = vadd.f32 %v829, %v894
        %v896 = vpop.f32.mrb[0].mxu0
        %v897 = vpop.f32.mrb[0].mxu0
        %v898 = vadd.f32 %v829, %v897
        %v899 = vpop.f32.mrb[0].mxu0
        %900 = vmatprep.mubr.bf16.mxu0 0
        %901 = vmatmul.mubr.bf16.gmra.mrb[0].mxu0 %v858
        %v902 = vpop.f32.mrb[0].mxu0
        %v903 = vadd.f32 %v829, %v902
        %v904 = vpop.f32.mrb[0].mxu0
        %v905 = vpop.f32.mrb[0].mxu0
        %v906 = vadd.f32 %v829, %v905
        %v907 = vpop.f32.mrb[0].mxu0
        %908 = vdwg.mxu0
        %v909 = vmax.f32 %v895, 0.0
        %v910 = vmax.f32 %v898, 0.0
        %v911 = vmax.f32 %v903, 0.0
        %v912 = vmax.f32 %v906, 0.0
        %v913 = vsel %vm650, %v895, -inf
        %914 = vmax.xlane.f32.xlu0 %v913
        %v915 = vpop.xlane.xlu0 %914
        %v916 = vsel %vm650, %v898, -inf
        %917 = vmax.xlane.f32.xlu0 %v916
        %v918 = vpop.xlane.xlu0 %917
        %v919 = vsel %vm650, %v903, -inf
        %920 = vmax.xlane.f32.xlu0 %v919
        %v921 = vpop.xlane.xlu0 %920
        %v922 = vsel %vm650, %v906, -inf
        %923 = vmax.xlane.f32.xlu0 %v922
        %v924 = vpop.xlane.xlu0 %923
        %v925 = vsub.f32 %v895, %v915
        %v926 = vsub.f32 %v898, %v918
        %v927 = vsub.f32 %v903, %v921
        %v928 = vsub.f32 %v906, %v924
        %v929 = vmul.f32 %v925, 1.442695
        %v930 = vpow.pop %v929
        %v931 = vmul.f32 %v926, 1.442695
        %v932 = vpow.pop %v931
        %v933 = vmul.f32 %v927, 1.442695
        %v934 = vpow.pop %v933
        %v935 = vmul.f32 %v928, 1.442695
        %v936 = vpow.pop %v935
        %v937 = vsel %vm650, %v930, 0.0
        %938 = vadd.xlane.f32.xlu0 %v937
        %v939 = vpop.xlane.xlu0 %938
        %v940 = vsel %vm650, %v932, 0.0
        %941 = vadd.xlane.f32.xlu0 %v940
        %v942 = vpop.xlane.xlu0 %941
        %v943 = vsel %vm650, %v934, 0.0
        %944 = vadd.xlane.f32.xlu0 %v943
        %v945 = vpop.xlane.xlu0 %944
        %v946 = vsel %vm650, %v936, 0.0
        %947 = vadd.xlane.f32.xlu0 %v946
        %v948 = vpop.xlane.xlu0 %947
        %v949 = vrcp.pop %v939
        %v950 = vmul.f32 %v930, %v949
        %v951 = vrcp.pop %v942
        %v952 = vmul.f32 %v932, %v951
        %v953 = vrcp.pop %v945
        %v954 = vmul.f32 %v934, %v953
        %v955 = vrcp.pop %v948
        %v956 = vmul.f32 %v936, %v955
        %v957 = vpack.c.bf16 %v910, %v909
        %v958 = vpack.c.bf16 %v912, %v911
        %v959 = vld [vmem:[%s7] sm:$0xf]
        %v960 = vld [vmem:[%s7 + $0x4] sm:$0xf]
        %v961 = vld [vmem:[%s7 + $0x8] sm:$0xf]
        %v962 = vld [vmem:[%s7 + $0xc] sm:$0xf]
        %v963 = vld [vmem:[%s7 + $0x10] sm:$0xf]
        %v964 = vld [vmem:[%s7 + $0x14] sm:$0xf]
        %v965 = vld [vmem:[%s7 + $0x18] sm:$0xf]
        %v966 = vld [vmem:[%s7 + $0x1c] sm:$0xf]
        %v967 = vlaneseq
        %v968 = vshrl.u32 %v967, 7
        %v969 = vsub.s32 5, %v968
        %v970 = vrot.slane %v408, %v969
        %973 = vrot.lane.b32.xlu0 %v957, 96
        %v974 = vpop.permute.xlu0 %973
        %975 = vrot.lane.b32.xlu0 %v958, 96
        %v976 = vpop.permute.xlu0 %975
        %v985 = vunpack.c.l.b16 %v959
        %v986 = vunpack.c.l.b16 %v960
        %v987 = vunpack.c.l.b16 %v961
        %v988 = vunpack.c.l.b16 %v962
        %v989 = vunpack.c.l.b16 %v963
        %v990 = vunpack.c.l.b16 %v964
        %v991 = vunpack.c.l.b16 %v965
        %v992 = vunpack.c.l.b16 %v966
        %v993 = vpack.c.b16 %v986, %v985
        %v994 = vpack.c.b16 %v988, %v987
        %v995 = vpack.c.b16 %v990, %v989
        %v996 = vpack.c.b16 %v992, %v991
        %v1002 = vsel %vm568, %v974, 0
        %v1005 = vsel %vm568, %v976, 0
        %1007 = vmatprep.subr.bf16.mxu0 0
        %1008 = vmatpush1.bf16.msra.mxu0 %v993
        %1009 = vmatprep.subr.bf16.mxu0 0
        %1010 = vmatpush1.bf16.msra.mxu0 %v994
        %1011 = vmatprep.subr.bf16.mxu0 0
        %1012 = vmatpush1.bf16.msra.mxu0 %v995
        %1013 = vmatprep.subr.bf16.mxu0 0
        %1014 = vmatpush1.bf16.msra.mxu0 %v996
        %1015 = vmatprep.subr.bf16.mxu0 0
        %1016 = vmatpush1.bf16.msra.mxu0 0
        %1017 = vmatprep.subr.bf16.mxu0 0
        %1018 = vmatpush1.bf16.msra.mxu0 0
        %1019 = vmatprep.subr.bf16.mxu0 0
        %1020 = vmatpush1.bf16.msra.mxu0 0
        %1021 = vmatprep.subr.bf16.mxu0 0
        %1022 = vmatpush1.bf16.msra.mxu0 0
        %1023 = vmatprep.subr.bf16.mxu0 0
        %1024 = vmatpush1.bf16.msra.mxu0 0
        %1025 = vmatprep.subr.bf16.mxu0 0
        %1026 = vmatpush1.bf16.msra.mxu0 0
        %1027 = vmatprep.subr.bf16.mxu0 0
        %1028 = vmatpush1.bf16.msra.mxu0 0
        %1029 = vmatprep.subr.bf16.mxu0 0
        %1030 = vmatpush1.bf16.msra.mxu0 0
        %1031 = vmatprep.subr.bf16.mxu0 0
        %1032 = vmatpush1.bf16.msra.mxu0 0
        %1033 = vmatprep.subr.bf16.mxu0 0
        %1034 = vmatpush1.bf16.msra.mxu0 0
        %1035 = vmatprep.subr.bf16.mxu0 0
        %1036 = vmatpush1.bf16.msra.mxu0 0
        %1037 = vmatprep.subr.bf16.mxu0 0
        %1038 = vmatpush1.bf16.msra.mxu0 0
        %1039 = vmatprep.mubr.bf16.mxu0 0
        %1040 = vmatmul.mubr.bf16.gmra.mrb[0].mxu0 %v1002
        %v1041 = vpop.f32.mrb[0].mxu0
        %v1042 = vadd.f32 %v970, %v1041
        %v1043 = vpop.f32.mrb[0].mxu0
        %v1044 = vpop.f32.mrb[0].mxu0
        %v1045 = vadd.f32 %v970, %v1044
        %v1046 = vpop.f32.mrb[0].mxu0
        %1047 = vmatprep.mubr.bf16.mxu0 0
        %1048 = vmatmul.mubr.bf16.gmra.mrb[0].mxu0 %v1005
        %v1049 = vpop.f32.mrb[0].mxu0
        %v1050 = vadd.f32 %v970, %v1049
        %v1051 = vpop.f32.mrb[0].mxu0
        %v1052 = vpop.f32.mrb[0].mxu0
        %v1053 = vadd.f32 %v970, %v1052
        %v1054 = vpop.f32.mrb[0].mxu0
        %1055 = vdwg.mxu0
        %1056 = vst [vmem:[%s370] sm:$0xff] %v1042
        %1057 = vst [vmem:[%s370 + $0x8] sm:$0xff] %v1045
        %1058 = vst [vmem:[%s370 + $0x10] sm:$0xff] %v1050
        %1059 = vst [vmem:[%s370 + $0x18] sm:$0xff] %v1053
        %1060 = vst.msk [vmem:[%s395] sm:$0xff] %vm650, %v692
        %1061 = vst.msk [vmem:[%s395 + $0x8] sm:$0xff] %vm650, %v695
        %1062 = vst.msk [vmem:[%s395 + $0x10] sm:$0xff] %vm650, %v700
        %1063 = vst.msk [vmem:[%s395 + $0x18] sm:$0xff] %vm650, %v703
        %1068 = vrot.lane.b32.xlu0 %v950, 32
        %v1069 = vpop.permute.xlu0 %1068
        %1070 = vrot.lane.b32.xlu0 %v952, 32
        %v1071 = vpop.permute.xlu0 %1070
        %1072 = vrot.lane.b32.xlu0 %v954, 32
        %v1073 = vpop.permute.xlu0 %1072
        %1074 = vrot.lane.b32.xlu0 %v956, 32
        %v1075 = vpop.permute.xlu0 %1074
        %vm1080 = vcmask 523520
        %1081 = vst.msk [vmem:[%s395] sm:$0xff] %vm1080, %v1069
        %1082 = vst.msk [vmem:[%s395 + $0x8] sm:$0xff] %vm1080, %v1071
        %1083 = vst.msk [vmem:[%s395 + $0x10] sm:$0xff] %vm1080, %v1073
        %1084 = vst.msk [vmem:[%s395 + $0x18] sm:$0xff] %vm1080, %v1075
        %s1085 = sand.u32 %s232, 1
        %s1086 = scalar_lea.sflag [#allocation3], %s1085
        %s1087 = sand.u32 %s232, 1
        %s1088 = smul.addr %s1087, 32
        %s1089 = scalar_lea.vmem [#allocation2], %s1088
        %s1090 = smul.u32 4, %s25
        %p1091 = scmp.lt.s32.totalorder %s1090, 7
        %s1092 = scalar_select %p1091, %s1090, 7
        %s1093 = smul.addr %s1092, 8
        %s1094 = scalar_lea.vmem %s10, %s1093
        // Predicated region
        $region57: #{market_regime_forward.1} parent=55 // pred_check
          %p1095 = pneg %p242
        $region58: #{market_regime_forward.1} parent=55 // pred_check_branch
          %1097 = sbr.rel (%p1095) target = $region60
        $region59: #{market_regime_forward.1} parent=55 // pred_region
          %s1098 = smul.u32 4, %s25
          %s1100 = ssub.s32 512, 512
          %1101 = vsyncadd %s1086, %s1100
          %s1102 = smul.addr %s1098, 128
          %s1103 = scalar_lea.hbm %s9, %s1102
          %s1104 = sshll.u32 %s1089, 4
          %s1105 = int_to_ptr.vmem [resolvable:$true] %s1104
          %1110 = dma.vmem_to_hbm [thread:$0]  %s1105, 512, %s1103, %s1086, 128, 128, 8
        $region60: #{market_regime_forward.1} parent=55 // pred_fallthru
          _
        // Predicated region
        $region61: #{market_regime_forward.1} parent=55 // pred_check
          %p1111 = pneg %p268
        $region62: #{market_regime_forward.1} parent=55 // pred_check_branch
          %1113 = sbr.rel (%p1111) target = $region64
        $region63: #{market_regime_forward.1} parent=55 // pred_region
          %s1114 = smul.u32 4, %s25
        $region64: #{market_regime_forward.1} parent=55 // pred_fallthru
          _
      $region56: #{market_regime_forward.1} parent=5 // pred_fallthru
        _
      %p1115 = scmp.le.s32.totalorder 2, %s20
      // Predicated region
      $region65: #{market_regime_forward.1} parent=5 // pred_check
        %p1116 = pneg %p1115
      $region66: #{market_regime_forward.1} parent=5 // pred_check_branch
        %1118 = sbr.rel (%p1116) target = $region68
      $region67: #{market_regime_forward.1} parent=5 // pred_region
        %s1119 = ssub.s32 %s20, 2
        // Predicated region
        $region69: #{market_regime_forward.1} parent=67 // pred_check
          %p1120 = pneg %p248
        $region70: #{market_regime_forward.1} parent=67 // pred_check_branch
          %1122 = sbr.rel (%p1120) target = $region72
        $region71: #{market_regime_forward.1} parent=67 // pred_region
          %s1123 = sand.u32 %s233, 1
          %s1124 = scalar_lea.sflag [#allocation3], %s1123
          %s1125 = sand.u32 %s233, 1
          %s1126 = smul.addr %s1125, 32
          %s1127 = scalar_lea.vmem [#allocation2], %s1126
          %1128 = dma.done %s1124, 512
        $region72: #{market_regime_forward.1} parent=67 // pred_fallthru
          _
        // Predicated region
        $region73: #{market_regime_forward.1} parent=67 // pred_check
          %p1129 = pneg %p274
        $region74: #{market_regime_forward.1} parent=67 // pred_check_branch
          %1131 = sbr.rel (%p1129) target = $region76
        $region75: #{market_regime_forward.1} parent=67 // pred_region
          %s1132 = smul.u32 4, %s26
          %p1133 = scmp.lt.s32.totalorder %s1132, 7
          %s1134 = scalar_select %p1133, %s1132, 7
          %s1135 = smul.addr %s1134, 8
          %s1136 = scalar_lea.vmem %s10, %s1135
        $region76: #{market_regime_forward.1} parent=67 // pred_fallthru
          _
      $region68: #{market_regime_forward.1} parent=5 // pred_fallthru
        _
    $region6: #{market_regime_forward.1} parent=1 // loop_footer
      %s24 = sadd.s32 1, %s20
    $region7: #{market_regime_forward.1} parent=1 // loop_footer_branch
      %19 = sbr.rel target = $region3
    $region8: #{market_regime_forward.1} parent=1 // loop_exit
      _
    %1137 = vsyncpa [#allocation3], 1
    %s1138 = scalar_lea.sflag [#allocation3], 1
    %1139 = vsyncpa %s1138, 1

</llo_original>
